<compile_context>
chip_gen: v6e
topology: v6e:2x2x1
jax: 0.10.0
libtpu: 0.0.40
codegen_flags: <defaults>
</compile_context>

<pallas_src>
import math

import jax
import jax.numpy as jnp
from jax import lax
from jax.experimental import pallas as pl
from jax.experimental.pallas import tpu as pltpu


# ----------------------------------------------------------------------------
# helpers
# ----------------------------------------------------------------------------
def _pick_tile(dim, target, align):
    """Largest tile <= target that is a multiple of `align` and divides `dim`.

    Falls back to the full dimension (always legal wrt the (8,128) constraint).
    NOTE: for ragged dims with no aligned divisor this fallback can produce a
    large whole-dimension block — acceptable for the moderate dims of this
    module, flagged here per review."""
    if dim <= target:
        return dim
    t = (target // align) * align
    while t >= align:
        if dim % t == 0:
            return t
        t -= align
    return dim


def _sublane_align(dtype):
    # bf16 packs 2 rows per sublane -> prefer multiples of 16 on the sublane dim
    return 16 if dtype == jnp.bfloat16 else 8


# ----------------------------------------------------------------------------
# Kernel 1: fused linear  y = x @ W + b   (bias kept/added in f32)
# ----------------------------------------------------------------------------
def _linear_fullk_kernel(x_ref, w_ref, b_ref, o_ref):
    acc = jnp.dot(x_ref[...], w_ref[...], preferred_element_type=jnp.float32)
    o_ref[...] = (acc + b_ref[...]).astype(o_ref.dtype)


def _linear_tiledk_kernel(x_ref, w_ref, b_ref, o_ref, acc_ref):
    k = pl.program_id(2)

    @pl.when(k == 0)
    def _():
        acc_ref[...] = jnp.zeros_like(acc_ref)

    acc_ref[...] += jnp.dot(x_ref[...], w_ref[...],
                            preferred_element_type=jnp.float32)

    @pl.when(k == pl.num_programs(2) - 1)
    def _():
        # bias fused into the final-K writeback (lane-dense (1, tn) block)
        o_ref[...] = (acc_ref[...] + b_ref[...]).astype(o_ref.dtype)


def linear(x2d, w, b, *, tm=512, tn=256, tk=512, max_k_block=2048,
           out_dtype=None):
    """x2d: (M, K), w: (K, N), b: (N,) f32 -> (M, N) in out_dtype."""
    M, K = x2d.shape
    N = w.shape[1]
    if out_dtype is None:
        out_dtype = x2d.dtype
    tm = _pick_tile(M, tm, _sublane_align(x2d.dtype))
    tn = _pick_tile(N, tn, 128)
    b2d = b.reshape(1, N).astype(jnp.float32)

    if K <= max_k_block:
        # Full-K block: no reduction grid axis, no accumulator init/epilogue,
        # weights streamed once per (i, j) tile only.
        return pl.pallas_call(
            _linear_fullk_kernel,
            out_shape=jax.ShapeDtypeStruct((M, N), out_dtype),
            grid_spec=pltpu.PrefetchScalarGridSpec(
                num_scalar_prefetch=0,
                grid=(M // tm, N // tn),
                in_specs=[
                    pl.BlockSpec((tm, K), lambda i, j: (i, 0)),
                    pl.BlockSpec((K, tn), lambda i, j: (0, j)),
                    pl.BlockSpec((1, tn), lambda i, j: (0, j)),
                ],
                out_specs=pl.BlockSpec((tm, tn), lambda i, j: (i, j)),
            ),
            compiler_params=pltpu.CompilerParams(
                dimension_semantics=("parallel", "parallel")),
        )(x2d, w, b2d)

    tk = _pick_tile(K, tk, 128)
    return pl.pallas_call(
        _linear_tiledk_kernel,
        out_shape=jax.ShapeDtypeStruct((M, N), out_dtype),
        grid_spec=pltpu.PrefetchScalarGridSpec(
            num_scalar_prefetch=0,
            grid=(M // tm, N // tn, K // tk),
            in_specs=[
                pl.BlockSpec((tm, tk), lambda i, j, k: (i, k)),
                pl.BlockSpec((tk, tn), lambda i, j, k: (k, j)),
                pl.BlockSpec((1, tn), lambda i, j, k: (0, j)),
            ],
            out_specs=pl.BlockSpec((tm, tn), lambda i, j, k: (i, j)),
            scratch_shapes=[pltpu.VMEM((tm, tn), jnp.float32)],
        ),
        compiler_params=pltpu.CompilerParams(
            dimension_semantics=("parallel", "parallel", "arbitrary")),
    )(x2d, w, b2d)


# ----------------------------------------------------------------------------
# Kernel 2: per-(batch, head, q-tile) attention
#   q/k/v arrive as contiguous per-head blocks from a (3, B, H, S, hd) layout;
#   scores = (q*scale) @ k^T (dot_general, no explicit transpose), softmax in
#   f32, probs cast back to the compute dtype for the (tq,S)@(S,hd) matmul.
# ----------------------------------------------------------------------------
def _make_attn_kernel(scale, return_attn, approx_recip):
    def _attn_kernel(q_ref, k_ref, v_ref, o_ref, *maybe_attn_ref):
        q = q_ref[0, 0, 0, :, :]                               # (tq, hd)
        k = k_ref[0, 0, 0, :, :]                               # (S, hd)
        v = v_ref[0, 0, 0, :, :]                               # (S, hd)

        # fold 1/sqrt(hd) into q: tq*hd multiplies instead of tq*S on scores
        q = q * jnp.asarray(scale, dtype=q.dtype)

        scores = lax.dot_general(                              # (tq, S) f32
            q, k, dimension_numbers=(((1,), (1,)), ((), ())),
            preferred_element_type=jnp.float32)

        m = jnp.max(scores, axis=-1, keepdims=True)
        p = jnp.exp(scores - m)
        denom = jnp.sum(p, axis=-1, keepdims=True)
        attn = p * pl.reciprocal(denom, approx=approx_recip)   # (tq, S) f32

        if return_attn:
            maybe_attn_ref[0][0, 0, :, :] = attn.astype(maybe_attn_ref[0].dtype)

        o_ref[0, 0, :, :] = jnp.dot(
            attn.astype(v.dtype), v,
            preferred_element_type=jnp.float32).astype(o_ref.dtype)

    return _attn_kernel


def attention(qkv5, *, tq=256, return_attn=True, out_dtype=None,
              attn_dtype=None, approx_recip=True):
    """qkv5: (3, B, H, S, hd) -> out (B, H, S, hd) [, attn (B, H, S, S)]."""
    three, B, H, S, hd = qkv5.shape
    assert three == 3
    if out_dtype is None:
        out_dtype = qkv5.dtype
    if attn_dtype is None:
        attn_dtype = qkv5.dtype
    tq = _pick_tile(S, tq, _sublane_align(qkv5.dtype))
    scale = 1.0 / math.sqrt(hd)

    kernel = _make_attn_kernel(scale, return_attn, approx_recip)

    in_specs = [
        pl.BlockSpec((1, 1, 1, tq, hd), lambda b, h, qi: (0, b, h, qi, 0)),  # q
        pl.BlockSpec((1, 1, 1, S, hd), lambda b, h, qi: (1, b, h, 0, 0)),    # k
        pl.BlockSpec((1, 1, 1, S, hd), lambda b, h, qi: (2, b, h, 0, 0)),    # v
    ]
    out_shapes = [jax.ShapeDtypeStruct((B, H, S, hd), out_dtype)]
    out_specs = [pl.BlockSpec((1, 1, tq, hd), lambda b, h, qi: (b, h, qi, 0))]
    if return_attn:
        out_shapes.append(jax.ShapeDtypeStruct((B, H, S, S), attn_dtype))
        out_specs.append(
            pl.BlockSpec((1, 1, tq, S), lambda b, h, qi: (b, h, qi, 0)))

    results = pl.pallas_call(
        kernel,
        out_shape=tuple(out_shapes),
        grid_spec=pltpu.PrefetchScalarGridSpec(
            num_scalar_prefetch=0,
            grid=(B, H, S // tq),
            in_specs=in_specs,
            out_specs=tuple(out_specs),
        ),
        compiler_params=pltpu.CompilerParams(
            dimension_semantics=("parallel", "parallel", "parallel")),
    )(qkv5, qkv5, qkv5)

    if return_attn:
        return results[0], results[1]
    return results[0], None


# ----------------------------------------------------------------------------
# MultiHeadAttention forward
# ----------------------------------------------------------------------------
class MultiHeadAttentionPallas:
    def __init__(self, dim, num_heads=8, dropout=0.1, key=None,
                 compute_dtype=jnp.bfloat16):
        assert dim % num_heads == 0
        self.dim = dim
        self.num_heads = num_heads
        self.head_dim = dim // num_heads
        self.dropout_p = dropout          # eval mode -> identity
        self.compute_dtype = compute_dtype

        if key is None:
            key = jax.random.PRNGKey(0)
        k1, k2, k3, k4 = jax.random.split(key, 4)
        bound = 1.0 / math.sqrt(dim)
        # nn.Linear(dim, 3*dim): y = x @ W_qkv + b_qkv  (W stored pre-transposed)
        self.w_qkv = jax.random.uniform(
            k1, (dim, 3 * dim), jnp.float32, -bound, bound)
        self.b_qkv = jax.random.uniform(
            k2, (3 * dim,), jnp.float32, -bound, bound)
        # nn.Linear(dim, dim)
        self.w_proj = jax.random.uniform(
            k3, (dim, dim), jnp.float32, -bound, bound)
        self.b_proj = jax.random.uniform(
            k4, (dim,), jnp.float32, -bound, bound)
        # compute-dtype copies cast once at construction (not per call)
        self.w_qkv_c = self.w_qkv.astype(compute_dtype)
        self.w_proj_c = self.w_proj.astype(compute_dtype)

    def __call__(self, x, mask=None, return_attn=True):
        # x: (B, S, D)
        B, S, D = x.shape
        H, hd = self.num_heads, self.head_dim
        if mask is not None:
            # TODO(synk): masked attention path (masked_fill) not implemented.
            raise NotImplementedError("mask is not supported in this kernel")

        cd = self.compute_dtype
        x2d = x.reshape(B * S, D).astype(cd)

        # QKV projection (Pallas matmul, bf16/f32 operands, f32 accumulation).
        qkv = linear(x2d, self.w_qkv_c, self.b_qkv, out_dtype=cd)      # (B*S, 3D)

        # Head-major layout (3, B, H, S, hd): contiguous per-head blocks for the
        # attention kernel (the split-heads transpose PyTorch also performs).
        qkv5 = qkv.reshape(B, S, 3, H, hd).transpose(2, 0, 3, 1, 4)

        out_bh, attn = attention(
            qkv5, return_attn=return_attn, out_dtype=cd, attn_dtype=cd,
            approx_recip=(cd != jnp.float32))                          # (B,H,S,hd)

        # merge heads -> (B*S, D) lane-dense rows for the output projection
        merged = out_bh.transpose(0, 2, 1, 3).reshape(B * S, D)

        proj = linear(merged, self.w_proj_c, self.b_proj, out_dtype=x.dtype)
        return proj.reshape(B, S, D), attn


# ----------------------------------------------------------------------------
# Pure-JAX reference (true f32) for correctness checks
# ----------------------------------------------------------------------------
def reference_forward(mha, x):
    hi = jax.lax.Precision.HIGHEST
    B, S, D = x.shape
    H, hd = mha.num_heads, mha.head_dim
    qkv = jnp.dot(x.reshape(B * S, D), mha.w_qkv, precision=hi) + mha.b_qkv
    qkv = qkv.reshape(B, S, 3 * D)
    q, k, v = qkv[..., :D], qkv[..., D:2 * D], qkv[..., 2 * D:]
    q = q.reshape(B, S, H, hd).transpose(0, 2, 1, 3)
    k = k.reshape(B, S, H, hd).transpose(0, 2, 1, 3)
    v = v.reshape(B, S, H, hd).transpose(0, 2, 1, 3)
    scores = jnp.einsum("bhqd,bhkd->bhqk", q, k, precision=hi) / math.sqrt(hd)
    attn = jax.nn.softmax(scores, axis=-1)
    out = jnp.einsum("bhqk,bhkd->bhqd", attn, v, precision=hi)
    out = out.transpose(0, 2, 1, 3).reshape(B * S, D)
    proj = (jnp.dot(out, mha.w_proj, precision=hi) + mha.b_proj).reshape(B, S, D)
    return proj, attn


if __name__ == "__main__":
    B, S, D, H = 2, 8, 32, 4   # dim=32, num_heads=4 -> head_dim=8
    key = jax.random.PRNGKey(0)
    kx, kw = jax.random.split(key)
    x = jax.random.normal(kx, (B, S, D), jnp.float32)

    proj_ref, attn_ref = reference_forward(
        MultiHeadAttentionPallas(D, num_heads=H, dropout=0.1, key=kw,
                                 compute_dtype=jnp.float32), x)

    # --- strict-correctness path: full f32 compute, exact reciprocal ---------
    mha_f32 = MultiHeadAttentionPallas(D, num_heads=H, dropout=0.1, key=kw,
                                       compute_dtype=jnp.float32)
    proj, attn = mha_f32(x)
    proj = jax.block_until_ready(proj)
    attn = jax.block_until_ready(attn)
    assert proj.shape == (B, S, D) and attn.shape == (B, H, S, S)
    assert jnp.allclose(proj, proj_ref, atol=1e-4, rtol=1e-4)
    assert jnp.allclose(attn, attn_ref, atol=1e-5, rtol=1e-4)

    # --- perf path: bf16 operands, f32 accumulation, approx EUP reciprocal ---
    mha_bf16 = MultiHeadAttentionPallas(D, num_heads=H, dropout=0.1, key=kw,
                                        compute_dtype=jnp.bfloat16)
    proj_b, attn_b = mha_bf16(x)
    proj_b = jax.block_until_ready(proj_b)
    attn_b = jax.block_until_ready(attn_b)
    assert proj_b.dtype == x.dtype and attn_b.dtype == jnp.bfloat16
    assert jnp.allclose(proj_b, proj_ref, atol=5e-2, rtol=5e-2)
    assert jnp.allclose(attn_b.astype(jnp.float32), attn_ref, atol=3e-2, rtol=5e-2)

    # --- weights-free fast path (no (B,H,S,S) writeback at all) --------------
    proj2, attn2 = mha_f32(x, return_attn=False)
    proj2 = jax.block_until_ready(proj2)
    assert attn2 is None
    assert jnp.allclose(proj2, proj_ref, atol=1e-4, rtol=1e-4)

    # --- exercise the K-tiled linear path (accumulator + pl.when epilogue) ---
    kk1, kk2, kk3 = jax.random.split(key, 3)
    x2 = jax.random.normal(kk1, (16, 256), jnp.float32)
    w2 = jax.random.normal(kk2, (256, 128), jnp.float32)
    b2 = jax.random.normal(kk3, (128,), jnp.float32)
    y2 = jax.block_until_ready(linear(x2, w2, b2, tk=128, max_k_block=128))
    y2_ref = jnp.dot(x2, w2, precision=jax.lax.Precision.HIGHEST) + b2
    assert jnp.allclose(y2, y2_ref, atol=5e-3, rtol=1e-4)

    print("KERNEL_OK")
</pallas_src>

<mosaic_0001>
module attributes {stable_mosaic.version = 11 : i64} {
  func.func @_linear_fullk_kernel(%arg0: i32, %arg1: i32, %arg2: memref<16x32xf32, #tpu.memory_space<vmem>>, %arg3: memref<32x96xf32, #tpu.memory_space<vmem>>, %arg4: memref<1x96xf32, #tpu.memory_space<vmem>>, %arg5: memref<16x96xf32, #tpu.memory_space<vmem>>) attributes {dimension_semantics = [#tpu.dimension_semantics<parallel>, #tpu.dimension_semantics<parallel>], iteration_bounds = array<i64: 1, 1>, scalar_prefetch = 0 : i64, scratch_operands = 0 : i64, tpu.core_type = #tpu.core_type<tc>, window_params = [{transform_indices = @transform_0, window_bounds = array<i64: 16, 32>}, {transform_indices = @transform_1, window_bounds = array<i64: 32, 96>}, {transform_indices = @transform_2, window_bounds = array<i64: 1, 96>}, {transform_indices = @transform_3, window_bounds = array<i64: 16, 96>}]} {
    %c0 = arith.constant 0 : index
    %c0_0 = arith.constant 0 : index
    %0 = vector.load %arg2[%c0, %c0_0] : memref<16x32xf32, #tpu.memory_space<vmem>>, vector<16x32xf32>
    %c0_1 = arith.constant 0 : index
    %c0_2 = arith.constant 0 : index
    %1 = vector.load %arg3[%c0_1, %c0_2] : memref<32x96xf32, #tpu.memory_space<vmem>>, vector<32x96xf32>
    %cst = arith.constant dense<0.000000e+00> : vector<16x96xf32>
    %2 = tpu.matmul %0, %1, %cst {dimension_numbers = #tpu.dot_dimension_numbers<[1], [0], [0], [1], [0, 0, 1, 1], [], []>} : vector<16x32xf32>, vector<32x96xf32>, vector<16x96xf32> -> vector<16x96xf32>
    %c0_3 = arith.constant 0 : index
    %c0_4 = arith.constant 0 : index
    %3 = vector.load %arg4[%c0_3, %c0_4] : memref<1x96xf32, #tpu.memory_space<vmem>>, vector<1x96xf32>
    %4 = vector.broadcast %3 : vector<1x96xf32> to vector<16x96xf32>
    %5 = arith.addf %2, %4 : vector<16x96xf32>
    %c0_5 = arith.constant 0 : index
    %c0_6 = arith.constant 0 : index
    %6 = vector.load %arg5[%c0_5, %c0_6] : memref<16x96xf32, #tpu.memory_space<vmem>>, vector<16x96xf32>
    tpu.vector_store %arg5[%c0_5, %c0_6], %5 {strides = array<i32>} : memref<16x96xf32, #tpu.memory_space<vmem>>, vector<16x96xf32>,
    return
  }
  func.func @transform_0(%arg0: i32, %arg1: i32) -> (i32, i32) {
    %c0_i32 = arith.constant 0 : i32
    %c0_i32_0 = arith.constant 0 : i32
    return %arg0, %c0_i32 : i32, i32
  }
  func.func @transform_1(%arg0: i32, %arg1: i32) -> (i32, i32) {
    %c0_i32 = arith.constant 0 : i32
    %c0_i32_0 = arith.constant 0 : i32
    return %c0_i32, %arg1 : i32, i32
  }
  func.func @transform_2(%arg0: i32, %arg1: i32) -> (i32, i32) {
    %c0_i32 = arith.constant 0 : i32
    %c0_i32_0 = arith.constant 0 : i32
    return %c0_i32, %arg1 : i32, i32
  }
  func.func @transform_3(%arg0: i32, %arg1: i32) -> (i32, i32) {
    %c0_i32 = arith.constant 0 : i32
    return %arg0, %arg1 : i32, i32
  }
}

</mosaic_0001>

<llo_original>
// kernel: tpu_custom_call.1
$region0: #{tpu_custom_call.1}
  #allocation0 [shape = 'u32[]', space=smem, size = 0x4, offset = 0x4, fixed_abs, tag = 'smem constant byte address 0x4 - core index']
  #allocation1 [shape = 'u32[144,128]{1,0:T(1,128)}', space=vmem, size = 0x12000, scoped, tag = 'internal scratch']
  %s0 = inlined_call_operand.hbm [shape: f32[16,32], index: 0, kind: input, shape index: {}]
  %s1 = inlined_call_operand.hbm [shape: f32[32,96], index: 1, kind: input, shape index: {}]
  %s2 = inlined_call_operand.vmem [shape: f32[1,96], index: 2, kind: input, shape index: {}]
  %s3 = inlined_call_operand.hbm [shape: f32[16,96], index: 3, kind: output, shape index: {}]
  %s4 = sld [smem:[#allocation0]]
  $region30: #{tpu_custom_call.1} parent=0
    _
  %s6 = ssub.s32 1, %s4
  %s7 = scalar_select 0, %s6, %s4
  $region1: #{tpu_custom_call.1} parent=0
    #allocation2 [shape = 'u8[8192]{0}', space=vmem, size = 0x2000, scoped, tag = 'input window, operand 0, single buffered']
    #allocation3 [shape = 's32[1]{0}', space=sflag, size = 0x4, scoped, tag = 'scoped memory for tpu_custom_call.1']
    #allocation4 [shape = 's32[1]{0}', space=sflag, size = 0x4, scoped, tag = 'scoped memory for tpu_custom_call.1']
    #allocation5 [shape = 'u8[16384]{0}', space=vmem, size = 0x4000, scoped, tag = 'input window, operand 1, single buffered']
    #allocation6 [shape = 's32[1]{0}', space=sflag, size = 0x4, scoped, tag = 'scoped memory for tpu_custom_call.1']
    #allocation7 [shape = 'u8[8192]{0}', space=vmem, size = 0x2000, scoped, tag = 'output window, operand 0, single buffered']
    %8 = vsyncpa [#allocation3], 0
    %9 = vsyncpa [#allocation6], 0
    %10 = vsyncpa [#allocation4], 0
    // Predicated region
    $region2: #{tpu_custom_call.1} parent=1 // pred_check
      _
    $region3: #{tpu_custom_call.1} parent=1 // pred_check_branch
      %12 = sbr.rel (0) target = $region5
    $region4: #{tpu_custom_call.1} parent=1 // pred_region
      %s14 = ssub.s32 256, 256
      %15 = vsyncadd [#allocation3], %s14
      %s16 = sshll.u32 [#allocation2], 4
      %s17 = int_to_ptr.vmem [resolvable:$true] %s16
      %22 = dma.hbm_to_vmem [thread:$0]  %s0, 256, %s17, [#allocation3], 128, 128, 8
    $region5: #{tpu_custom_call.1} parent=1 // pred_fallthru
      _
    // Predicated region
    $region6: #{tpu_custom_call.1} parent=1 // pred_check
      _
    $region7: #{tpu_custom_call.1} parent=1 // pred_check_branch
      %24 = sbr.rel (0) target = $region9
    $region8: #{tpu_custom_call.1} parent=1 // pred_region
      %s26 = ssub.s32 512, 512
      %27 = vsyncadd [#allocation6], %s26
      %s28 = sshll.u32 [#allocation5], 4
      %s29 = int_to_ptr.vmem [resolvable:$true] %s28
      %34 = dma.hbm_to_vmem [thread:$0]  %s1, 512, %s29, [#allocation6], 128, 128, 8
    $region9: #{tpu_custom_call.1} parent=1 // pred_fallthru
      _
    // Predicated region
    $region10: #{tpu_custom_call.1} parent=1 // pred_check
      _
    $region11: #{tpu_custom_call.1} parent=1 // pred_check_branch
      %36 = sbr.rel (0) target = $region13
    $region12: #{tpu_custom_call.1} parent=1 // pred_region
      _
    $region13: #{tpu_custom_call.1} parent=1 // pred_fallthru
      _
    // Predicated region
    $region14: #{tpu_custom_call.1} parent=1 // pred_check
      _
    $region15: #{tpu_custom_call.1} parent=1 // pred_check_branch
      %38 = sbr.rel (0) target = $region17
    $region16: #{tpu_custom_call.1} parent=1 // pred_region
      %39 = dma.done [#allocation3], 256
    $region17: #{tpu_custom_call.1} parent=1 // pred_fallthru
      _
    // Predicated region
    $region18: #{tpu_custom_call.1} parent=1 // pred_check
      _
    $region19: #{tpu_custom_call.1} parent=1 // pred_check_branch
      %41 = sbr.rel (0) target = $region21
    $region20: #{tpu_custom_call.1} parent=1 // pred_region
      %42 = dma.done [#allocation6], 512
    $region21: #{tpu_custom_call.1} parent=1 // pred_fallthru
      _
    %v43 = vld [vmem:[#allocation2] sm:$0xff]
    %v44 = vld [vmem:[#allocation2 + $0x8] sm:$0xff]
    %v45 = vld [vmem:[#allocation5] sm:$0xff]
    %v46 = vld [vmem:[#allocation5 + $0x8] sm:$0xff]
    %v47 = vld [vmem:[#allocation5 + $0x10] sm:$0xff]
    %v48 = vld [vmem:[#allocation5 + $0x18] sm:$0xff]
    %v49 = vld [vmem:[%s2] sm:$0x1]
    %v51 = vlaneseq
    %v52 = vshrl.u32 %v51, 7
    %v53 = vsub.s32 0, %v52
    %v54 = vrot.slane %v49, %v53
    %vm56 = vcmask 261120
    %v58 = vsel %vm56, %v43, 0
    %v61 = vsel %vm56, %v44, 0
    %63 = vmatprep.subr.mxu0 0.0
    %64 = vmatpush1.msra.mxu0 0.0
    %65 = vmatprep.subr.mxu0 0.0
    %66 = vmatpush1.msra.mxu0 0.0
    %67 = vmatprep.subr.mxu0 0.0
    %68 = vmatpush1.msra.mxu0 0.0
    %69 = vmatprep.subr.mxu0 0.0
    %70 = vmatpush1.msra.mxu0 0.0
    %71 = vmatprep.subr.mxu0 0.0
    %72 = vmatpush1.msra.mxu0 0.0
    %73 = vmatprep.subr.mxu0 0.0
    %74 = vmatpush1.msra.mxu0 0.0
    %75 = vmatprep.subr.mxu0 0.0
    %76 = vmatpush1.msra.mxu0 0.0
    %77 = vmatprep.subr.mxu0 0.0
    %78 = vmatpush1.msra.mxu0 0.0
    %79 = vmatprep.subr.mxu0 0.0
    %80 = vmatpush1.msra.mxu0 0.0
    %81 = vmatprep.subr.mxu0 0.0
    %82 = vmatpush1.msra.mxu0 0.0
    %83 = vmatprep.subr.mxu0 0.0
    %84 = vmatpush1.msra.mxu0 0.0
    %85 = vmatprep.subr.mxu0 0.0
    %86 = vmatpush1.msra.mxu0 0.0
    %87 = vmatprep.subr.mxu0 0.0
    %88 = vmatpush1.msra.mxu0 %v48
    %89 = vmatprep.subr.mxu0 0.0
    %90 = vmatpush1.msra.mxu0 %v47
    %91 = vmatprep.subr.mxu0 0.0
    %92 = vmatpush1.msra.mxu0 %v46
    %93 = vmatprep.subr.mxu0 0.0
    %94 = vmatpush1.msra.mxu0 %v45
    %95 = vmatprep.subr.mxu0 0.0
    %96 = vmatpush2.msra.mxu0 0.0
    %97 = vmatprep.subr.mxu0 0.0
    %98 = vmatpush2.msra.mxu0 0.0
    %99 = vmatprep.subr.mxu0 0.0
    %100 = vmatpush2.msra.mxu0 0.0
    %101 = vmatprep.subr.mxu0 0.0
    %102 = vmatpush2.msra.mxu0 0.0
    %103 = vmatprep.subr.mxu0 0.0
    %104 = vmatpush2.msra.mxu0 0.0
    %105 = vmatprep.subr.mxu0 0.0
    %106 = vmatpush2.msra.mxu0 0.0
    %107 = vmatprep.subr.mxu0 0.0
    %108 = vmatpush2.msra.mxu0 0.0
    %109 = vmatprep.subr.mxu0 0.0
    %110 = vmatpush2.msra.mxu0 0.0
    %111 = vmatprep.subr.mxu0 0.0
    %112 = vmatpush2.msra.mxu0 0.0
    %113 = vmatprep.subr.mxu0 0.0
    %114 = vmatpush2.msra.mxu0 0.0
    %115 = vmatprep.subr.mxu0 0.0
    %116 = vmatpush2.msra.mxu0 0.0
    %117 = vmatprep.subr.mxu0 0.0
    %118 = vmatpush2.msra.mxu0 0.0
    %119 = vmatprep.subr.mxu0 0.0
    %120 = vmatpush2.msra.mxu0 0.0
    %121 = vmatprep.subr.mxu0 0.0
    %122 = vmatpush2.msra.mxu0 0.0
    %123 = vmatprep.subr.mxu0 0.0
    %124 = vmatpush2.msra.mxu0 0.0
    %125 = vmatprep.subr.mxu0 0.0
    %126 = vmatpush2.msra.mxu0 0.0
    %127 = vmatprep.mubr.f32.mxu0 0.0
    %128 = vmatmul.mubr.f32.gmra.mxu0 %v58
    %v129 = vpop.f32.mrf.mxu0
    %v130 = vadd.f32 %v54, %v129
    %v131 = vpop.f32.mrf.mxu0
    %132 = vmatprep.mubr.f32.mxu0 0.0
    %133 = vmatmul.mubr.f32.gmra.mxu0 %v61
    %v134 = vpop.f32.mrf.mxu0
    %v135 = vadd.f32 %v54, %v134
    %v136 = vpop.f32.mrf.mxu0
    %137 = vdwg.mxu0
    %vm138 = vcmask 785408
    %139 = vst.msk [vmem:[#allocation7] sm:$0xff] %vm138, %v130
    %140 = vst.msk [vmem:[#allocation7 + $0x8] sm:$0xff] %vm138, %v135
    // Predicated region
    $region22: #{tpu_custom_call.1} parent=1 // pred_check
      _
    $region23: #{tpu_custom_call.1} parent=1 // pred_check_branch
      %142 = sbr.rel (0) target = $region25
    $region24: #{tpu_custom_call.1} parent=1 // pred_region
      %s144 = ssub.s32 256, 256
      %145 = vsyncadd [#allocation4], %s144
      %s146 = sshll.u32 [#allocation7], 4
      %s147 = int_to_ptr.vmem [resolvable:$true] %s146
      %152 = dma.vmem_to_hbm [thread:$0]  %s147, 256, %s3, [#allocation4], 128, 128, 8
    $region25: #{tpu_custom_call.1} parent=1 // pred_fallthru
      _
    // Predicated region
    $region26: #{tpu_custom_call.1} parent=1 // pred_check
      _
    $region27: #{tpu_custom_call.1} parent=1 // pred_check_branch
      %154 = sbr.rel (0) target = $region29
    $region28: #{tpu_custom_call.1} parent=1 // pred_region
      %155 = dma.done [#allocation4], 256
    $region29: #{tpu_custom_call.1} parent=1 // pred_fallthru
      _
    %156 = vsyncpa [#allocation3], 1
    %157 = vsyncpa [#allocation6], 1
    %158 = vsyncpa [#allocation4], 1

</llo_original>
